<compile_context>
chip_gen: v7x
topology: tpu7x:2x2x1
jax: 0.10.0
libtpu: 0.0.40
codegen_flags: <defaults>
</compile_context>

<pallas_src>
import functools
import math

import jax
import jax.numpy as jnp
from jax import lax
from jax.experimental import pallas as pl
from jax.experimental.pallas import tpu as pltpu

LANE = 128
SUBLANE = 8


def _reg_kernel(x_ref, o_ref, acc_ref, *, tile_rows, strip_rows, rows,
                blocks_per_split, need_mask):
    """Accumulate S1 = sum(x*log(x+1e-8)) and S2 = sum(|x|) for this split."""
    s = pl.program_id(0)            # split (core-parallel on multi-TC chips)
    i = pl.program_id(1)            # block within split (sequential reduction)

    @pl.when(i == 0)
    def _():
        acc_ref[...] = jnp.zeros_like(acc_ref)

    n_strips = tile_rows // strip_rows
    unroll = 2 if (n_strips > 1 and n_strips % 2 == 0) else 1

    def _accumulate(x):
        xf = x.astype(jnp.float32)
        t1 = xf * jnp.log(xf + 1e-8)              # entropy partial (EUP log)
        t2 = jnp.abs(xf)                          # sparsity partial
        # vreg-wise partial sums: (strip_rows,128)->(strip_rows//8,8,128),
        # sum over leading axis is pure VPU adds (no XLU reduce in hot loop).
        acc_ref[0] += t1.reshape(-1, SUBLANE, LANE).sum(axis=0)
        acc_ref[1] += t2.reshape(-1, SUBLANE, LANE).sum(axis=0)

    def _full_body(k, carry):
        off = pl.multiple_of(k * strip_rows, strip_rows)
        _accumulate(x_ref[pl.ds(off, strip_rows), :])
        return carry

    if not need_mask:
        # Steady state: no masks, no per-block row math.
        lax.fori_loop(0, n_strips, _full_body, 0, unroll=unroll)
    else:
        blk = s * blocks_per_split + i
        blk_start = blk * tile_rows
        is_full = blk_start + tile_rows <= rows   # block fully in range
        has_rows = blk_start < rows               # block overlaps valid rows

        @pl.when(is_full)
        def _():
            lax.fori_loop(0, n_strips, _full_body, 0, unroll=unroll)

        def _masked_body(k, carry):
            off = pl.multiple_of(k * strip_rows, strip_rows)
            x = x_ref[pl.ds(off, strip_rows), :]
            row_ids = (blk_start + off
                       + lax.broadcasted_iota(jnp.int32, x.shape, 0))
            # Mask garbage rows before the log: 0*log(1e-8)=0 and |0|=0.
            _accumulate(jnp.where(row_ids < rows, x, jnp.zeros_like(x)))
            return carry

        @pl.when(jnp.logical_and(has_rows, jnp.logical_not(is_full)))
        def _():
            lax.fori_loop(0, n_strips, _masked_body, 0)
        # Blocks with blk_start >= rows (clamped duplicates) do no compute.

    @pl.when(i == pl.num_programs(1) - 1)
    def _():
        o_ref[0] = acc_ref[...]   # (2,8,128) vector partials, unmasked stores


def _jax_partial_sums(x_f32):
    s1 = jnp.sum(x_f32 * jnp.log(x_f32 + 1e-8))
    s2 = jnp.sum(jnp.abs(x_f32))
    return s1, s2


def _detected_tensorcores():
    # v7x has 2 TensorCores per chip; v5e/v6e have 1.
    try:
        kind = (jax.devices()[0].device_kind or "").lower()
    except Exception:
        return 1
    return 2 if "v7" in kind else 1


def temporal_attention_regularization(attention_weights,
                                      entropy_weight=0.01,
                                      sparsity_weight=0.005,
                                      target_block_bytes=8 * 1024 * 1024,
                                      strip_rows=256,
                                      n_splits=None):
    """attention_weights: (B*H*W, heads, T, T) with N = B*H*W. Returns scalar f32."""
    shape = attention_weights.shape
    n_total = int(math.prod(shape))
    n_entropy = n_total // int(shape[-1])     # count of (row, head, t) triples

    flat = attention_weights.reshape(-1)      # free bitcast (contiguous)
    rows = n_total // LANE
    tail_count = n_total - rows * LANE

    # Rare (<128-element) tail reduced in plain JAX — no full-tensor pad.
    if tail_count > 0:
        tail = flat[rows * LANE:].astype(jnp.float32)
        s1_tail, s2_tail = _jax_partial_sums(tail)
    else:
        s1_tail = s2_tail = jnp.float32(0.0)

    if rows < SUBLANE:
        # Tiny input: not worth a kernel launch; do it all in JAX.
        s1, s2 = _jax_partial_sums(flat.astype(jnp.float32))
        entropy_loss = s1 / float(n_entropy)
        sparsity_loss = s2 / float(n_total)
        return entropy_weight * entropy_loss + sparsity_weight * sparsity_loss

    # Lane-dense slab in the input's native dtype (cast happens in-kernel).
    # NOTE: when tail_count > 0 the prefix slice costs one extra HBM copy; the
    # usual (N, heads, T, T) shapes are 128-aligned and hit the free path.
    x2d = (flat if tail_count == 0 else flat[:rows * LANE]).reshape(rows, LANE)
    itemsize = int(attention_weights.dtype.itemsize)

    # --- block / strip sizing (byte-based, dtype-aware) ----------------------
    strip_rows = max(SUBLANE, (int(strip_rows) // SUBLANE) * SUBLANE)
    if strip_rows > rows:
        strip_rows = (rows // SUBLANE) * SUBLANE        # rows >= SUBLANE here
    rows_per_block = max(1, int(target_block_bytes) // (LANE * itemsize))
    tile_rows = max(strip_rows, (rows_per_block // strip_rows) * strip_rows)
    tile_rows = min(tile_rows, (rows // strip_rows) * strip_rows)

    n_blocks = pl.cdiv(rows, tile_rows)

    detected_cores = _detected_tensorcores()
    if n_splits is None:
        n_splits = detected_cores          # split only pays on multi-TC chips
    n_splits = max(1, min(int(n_splits), n_blocks))
    bps = pl.cdiv(n_blocks, n_splits)                   # blocks per split
    need_mask = (n_splits * bps * tile_rows != rows)    # any overhang/duplicate

    if n_splits * bps == n_blocks:
        in_index_map = lambda s, i: (s * bps + i, 0)
    else:
        # Clamp duplicate trailing blocks; the kernel skips their compute.
        in_index_map = lambda s, i: (jnp.minimum(s * bps + i, n_blocks - 1), 0)

    kernel = functools.partial(
        _reg_kernel,
        tile_rows=tile_rows,
        strip_rows=strip_rows,
        rows=rows,
        blocks_per_split=bps,
        need_mask=need_mask,
    )

    # Double-buffered input + tiny scratch; lift v5e's 16 MiB default scoped
    # limit while staying well under v7x's 64 MiB physical VMEM.
    block_bytes = tile_rows * LANE * itemsize
    vmem_limit = int(min(60 * 1024 * 1024,
                         max(32 * 1024 * 1024, 3 * block_bytes + (2 << 20))))

    core_parallel = getattr(pltpu, "CORE_PARALLEL", None)
    arbitrary = getattr(pltpu, "ARBITRARY", "arbitrary")
    if n_splits > 1 and detected_cores > 1 and core_parallel is not None:
        dims = (core_parallel, arbitrary)     # put the split on both v7x TCs
    else:
        dims = ("parallel", "arbitrary")

    cost = pl.CostEstimate(
        flops=5 * n_total,
        transcendentals=n_total,
        bytes_accessed=n_total * itemsize + n_splits * 2 * SUBLANE * LANE * 4,
    )

    partials = pl.pallas_call(
        kernel,
        out_shape=jax.ShapeDtypeStruct((n_splits, 2, SUBLANE, LANE),
                                       jnp.float32),
        grid_spec=pltpu.PrefetchScalarGridSpec(
            num_scalar_prefetch=0,
            grid=(n_splits, bps),
            in_specs=[pl.BlockSpec((tile_rows, LANE), in_index_map)],
            out_specs=pl.BlockSpec((1, 2, SUBLANE, LANE),
                                   lambda s, i: (s, 0, 0, 0)),
            scratch_shapes=[pltpu.VMEM((2, SUBLANE, LANE), jnp.float32)],
        ),
        compiler_params=pltpu.CompilerParams(
            dimension_semantics=dims,
            vmem_limit_bytes=vmem_limit,
        ),
        cost_estimate=cost,
    )(x2d)

    # Tiny final combine in JAX (n_splits * 2 * 8 * 128 elements + tail).
    s1 = jnp.sum(partials[:, 0]) + s1_tail
    s2 = jnp.sum(partials[:, 1]) + s2_tail
    entropy_loss = s1 / float(n_entropy)      # == -mean(entropy)
    sparsity_loss = s2 / float(n_total)
    return entropy_weight * entropy_loss + sparsity_weight * sparsity_loss


def _reference(attention_weights, entropy_weight=0.01, sparsity_weight=0.005):
    att = attention_weights.astype(jnp.float32)
    log_att = jnp.log(att + 1e-8)
    entropy = -jnp.sum(att * log_att, axis=-1)
    entropy_loss = -jnp.mean(entropy)
    sparsity_loss = jnp.mean(jnp.abs(att))
    return entropy_weight * entropy_loss + sparsity_weight * sparsity_loss


if __name__ == "__main__":
    key = jax.random.PRNGKey(0)
    k1, k2, k3, k4 = jax.random.split(key, 4)

    # Case 1: module-consistent shape. B=2, spatial 4x4 -> N=32, heads=4, T=8
    # => attention_weights (32, 4, 8, 8), softmax over last dim. Clean path.
    att1 = jax.nn.softmax(
        jax.random.normal(k1, (32, 4, 8, 8), dtype=jnp.float32), axis=-1)
    out1 = jax.block_until_ready(temporal_attention_regularization(att1))
    ref1 = _reference(att1)
    assert jnp.allclose(out1, ref1, atol=1e-6, rtol=1e-5), (out1, ref1)

    # Case 2: exercises the masked tail block and the 2-split reduction path
    # (rows=41 -> tile_rows=40, 2 blocks across 2 splits).
    att2 = jax.nn.softmax(
        jax.random.normal(k2, (41, 2, 8, 8), dtype=jnp.float32), axis=-1)
    out2 = jax.block_until_ready(
        temporal_attention_regularization(att2, n_splits=2))
    ref2 = _reference(att2)
    assert jnp.allclose(out2, ref2, atol=1e-6, rtol=1e-5), (out2, ref2)

    # Case 3: n_total % 128 != 0 -> <128-element tail handled in plain JAX,
    # plus a masked partial block in the kernel (rows=9, tile_rows=8).
    att3 = jax.nn.softmax(
        jax.random.normal(k3, (5, 3, 9, 9), dtype=jnp.float32), axis=-1)
    out3 = jax.block_until_ready(temporal_attention_regularization(att3))
    ref3 = _reference(att3)
    assert jnp.allclose(out3, ref3, atol=1e-6, rtol=1e-5), (out3, ref3)

    # Case 4: bf16 input, multiple blocks and multiple strips per block
    # (rows=512, strip_rows=64, tile_rows=256 -> 2 blocks x 4 strips).
    att4 = jax.nn.softmax(
        jax.random.normal(k4, (64, 4, 16, 16), dtype=jnp.float32), axis=-1
    ).astype(jnp.bfloat16)
    out4 = jax.block_until_ready(
        temporal_attention_regularization(att4,
                                          target_block_bytes=64 * 1024,
                                          strip_rows=64))
    ref4 = _reference(att4)
    assert jnp.allclose(out4, ref4, atol=1e-5, rtol=1e-4), (out4, ref4)

    print("KERNEL_OK")
</pallas_src>

<mosaic_0001>
module attributes {stable_mosaic.version = 11 : i64} {
  func.func @_reg_kernel(%arg0: i32, %arg1: i32, %arg2: memref<64x128xf32, #tpu.memory_space<vmem>>, %arg3: memref<1x2x8x128xf32, #tpu.memory_space<vmem>>, %arg4: memref<2x8x128xf32, #tpu.memory_space<vmem>>) attributes {dimension_semantics = [#tpu.dimension_semantics<parallel>, #tpu.dimension_semantics<arbitrary>], iteration_bounds = array<i64: 1, 1>, scalar_prefetch = 0 : i64, scratch_operands = 1 : i64, tpu.core_type = #tpu.core_type<tc>, window_params = [{transform_indices = @transform_0, window_bounds = array<i64: 64, 128>}, {transform_indices = @transform_1, window_bounds = array<i64: 1, 2, 8, 128>}]} {
    %c0_i32 = arith.constant 0 : i32
    %0 = arith.cmpi eq, %arg1, %c0_i32 : i32
    %1 = arith.extui %0 : i1 to i32
    %c0_i32_0 = arith.constant 0 : i32
    %2 = arith.cmpi ne, %1, %c0_i32_0 : i32
    scf.if %2 {
      %cst_17 = arith.constant 0.000000e+00 : f32
      %31 = vector.broadcast %cst_17 : f32 to vector<2x8x128xf32>
      %c0_18 = arith.constant 0 : index
      %c0_19 = arith.constant 0 : index
      %c0_20 = arith.constant 0 : index
      %32 = vector.load %arg4[%c0_18, %c0_19, %c0_20] : memref<2x8x128xf32, #tpu.memory_space<vmem>>, vector<2x8x128xf32>
      tpu.vector_store %arg4[%c0_18, %c0_19, %c0_20], %31 {strides = array<i32>} : memref<2x8x128xf32, #tpu.memory_space<vmem>>, vector<2x8x128xf32>,
    } else {
    }
    %c0_i32_1 = arith.constant 0 : i32
    %c64_i32 = arith.constant 64 : i32
    %3 = arith.muli %c0_i32_1, %c64_i32 : i32
    %4 = tpu.assume_multiple %3, 64 : i32
    %5 = arith.index_cast %4 : i32 to index
    %c0 = arith.constant 0 : index
    %6 = vector.load %arg2[%5, %c0] : memref<64x128xf32, #tpu.memory_space<vmem>>, vector<64x128xf32>
    %cst = arith.constant 9.99999993E-9 : f32
    %7 = vector.broadcast %cst : f32 to vector<64x128xf32>
    %8 = arith.addf %6, %7 : vector<64x128xf32>
    %9 = math.log %8 : vector<64x128xf32>
    %10 = arith.mulf %6, %9 : vector<64x128xf32>
    %11 = math.absf %6 : vector<64x128xf32>
    %c0_2 = arith.constant 0 : index
    %c0_3 = arith.constant 0 : index
    %c0_4 = arith.constant 0 : index
    %12 = vector.load %arg4[%c0_2, %c0_3, %c0_4] : memref<2x8x128xf32, #tpu.memory_space<vmem>>, vector<1x8x128xf32>
    %13 = vector.shape_cast %12 : vector<1x8x128xf32> to vector<8x128xf32>
    %14 = vector.shape_cast %10 : vector<64x128xf32> to vector<8x8x128xf32>
    %cst_5 = arith.constant dense<0.000000e+00> : vector<8x128xf32>
    %15 = vector.multi_reduction <add>, %14, %cst_5 [0] : vector<8x8x128xf32> to vector<8x128xf32>
    %16 = arith.addf %13, %15 : vector<8x128xf32>
    %c0_6 = arith.constant 0 : index
    %c0_7 = arith.constant 0 : index
    %c0_8 = arith.constant 0 : index
    %17 = vector.load %arg4[%c0_6, %c0_7, %c0_8] : memref<2x8x128xf32, #tpu.memory_space<vmem>>, vector<1x8x128xf32>
    %18 = vector.shape_cast %17 : vector<1x8x128xf32> to vector<8x128xf32>
    %19 = vector.shape_cast %16 : vector<8x128xf32> to vector<1x8x128xf32>
    tpu.vector_store %arg4[%c0_6, %c0_7, %c0_8], %19 {strides = array<i32>} : memref<2x8x128xf32, #tpu.memory_space<vmem>>, vector<1x8x128xf32>,
    %c1 = arith.constant 1 : index
    %c0_9 = arith.constant 0 : index
    %c0_10 = arith.constant 0 : index
    %20 = vector.load %arg4[%c1, %c0_9, %c0_10] : memref<2x8x128xf32, #tpu.memory_space<vmem>>, vector<1x8x128xf32>
    %21 = vector.shape_cast %20 : vector<1x8x128xf32> to vector<8x128xf32>
    %22 = vector.shape_cast %11 : vector<64x128xf32> to vector<8x8x128xf32>
    %cst_11 = arith.constant dense<0.000000e+00> : vector<8x128xf32>
    %23 = vector.multi_reduction <add>, %22, %cst_11 [0] : vector<8x8x128xf32> to vector<8x128xf32>
    %24 = arith.addf %21, %23 : vector<8x128xf32>
    %c1_12 = arith.constant 1 : index
    %c0_13 = arith.constant 0 : index
    %c0_14 = arith.constant 0 : index
    %25 = vector.load %arg4[%c1_12, %c0_13, %c0_14] : memref<2x8x128xf32, #tpu.memory_space<vmem>>, vector<1x8x128xf32>
    %26 = vector.shape_cast %25 : vector<1x8x128xf32> to vector<8x128xf32>
    %27 = vector.shape_cast %24 : vector<8x128xf32> to vector<1x8x128xf32>
    tpu.vector_store %arg4[%c1_12, %c0_13, %c0_14], %27 {strides = array<i32>} : memref<2x8x128xf32, #tpu.memory_space<vmem>>, vector<1x8x128xf32>,
    %c1_i32 = arith.constant 1 : i32
    %c0_i32_15 = arith.constant 0 : i32
    %28 = arith.cmpi eq, %arg1, %c0_i32_15 : i32
    %29 = arith.extui %28 : i1 to i32
    %c0_i32_16 = arith.constant 0 : i32
    %30 = arith.cmpi ne, %29, %c0_i32_16 : i32
    scf.if %30 {
      %c0_17 = arith.constant 0 : index
      %c0_18 = arith.constant 0 : index
      %c0_19 = arith.constant 0 : index
      %31 = vector.load %arg4[%c0_17, %c0_18, %c0_19] : memref<2x8x128xf32, #tpu.memory_space<vmem>>, vector<2x8x128xf32>
      %c0_20 = arith.constant 0 : index
      %c0_21 = arith.constant 0 : index
      %c0_22 = arith.constant 0 : index
      %c0_23 = arith.constant 0 : index
      %32 = vector.load %arg3[%c0_20, %c0_21, %c0_22, %c0_23] : memref<1x2x8x128xf32, #tpu.memory_space<vmem>>, vector<1x2x8x128xf32>
      %33 = vector.shape_cast %32 : vector<1x2x8x128xf32> to vector<2x8x128xf32>
      %34 = vector.shape_cast %31 : vector<2x8x128xf32> to vector<1x2x8x128xf32>
      tpu.vector_store %arg3[%c0_20, %c0_21, %c0_22, %c0_23], %34 {strides = array<i32>} : memref<1x2x8x128xf32, #tpu.memory_space<vmem>>, vector<1x2x8x128xf32>,
    } else {
    }
    return
  }
  func.func @transform_0(%arg0: i32, %arg1: i32) -> (i32, i32) {
    %c1_i32 = arith.constant 1 : i32
    %0 = arith.muli %arg0, %c1_i32 : i32
    %1 = arith.addi %0, %arg1 : i32
    %c0_i32 = arith.constant 0 : i32
    %c0_i32_0 = arith.constant 0 : i32
    return %1, %c0_i32 : i32, i32
  }
  func.func @transform_1(%arg0: i32, %arg1: i32) -> (i32, i32, i32, i32) {
    %c0_i32 = arith.constant 0 : i32
    %c0_i32_0 = arith.constant 0 : i32
    %c0_i32_1 = arith.constant 0 : i32
    %c0_i32_2 = arith.constant 0 : i32
    return %arg0, %c0_i32, %c0_i32_0, %c0_i32_1 : i32, i32, i32, i32
  }
}

</mosaic_0001>

<llo_original>
// kernel: tpu_custom_call.1
$region0: #{tpu_custom_call.1}
  #allocation0 [shape = 'u32[]', space=smem, size = 0x4, offset = 0x4, fixed_abs, tag = 'smem constant byte address 0x4 - core index']
  #allocation1 [shape = 'u32[144,128]{1,0:T(1,128)}', space=vmem, size = 0x12000, scoped, tag = 'internal scratch']
  #allocation2 [shape = 'f32[2,8,128]{2,1,0:T(8,128)}', space=vmem, size = 0x2000, scoped, tag = 'scratch operand']
  %s0 = inlined_call_operand.hbm [shape: f32[64,128], index: 0, kind: input, shape index: {}]
  %s1 = inlined_call_operand.hbm [shape: f32[1,2,8,128], index: 1, kind: output, shape index: {}]
  %s2 = sld [smem:[#allocation0]]
  $region26: #{tpu_custom_call.1} parent=0
    _
  %s4 = ssub.s32 1, %s2
  %s5 = scalar_select 0, %s4, %s2
  $region1: #{tpu_custom_call.1} parent=0
    #allocation3 [shape = 'u8[32768]{0}', space=vmem, size = 0x8000, scoped, tag = 'input window, operand 0, single buffered']
    #allocation4 [shape = 's32[1]{0}', space=sflag, size = 0x4, scoped, tag = 'scoped memory for tpu_custom_call.1']
    #allocation5 [shape = 's32[1]{0}', space=sflag, size = 0x4, scoped, tag = 'scoped memory for tpu_custom_call.1']
    #allocation6 [shape = 'u8[8192]{0}', space=vmem, size = 0x2000, scoped, tag = 'output window, operand 0, single buffered']
    %6 = vsyncpa [#allocation4], 0
    %7 = vsyncpa [#allocation5], 0
    // Predicated region
    $region2: #{tpu_custom_call.1} parent=1 // pred_check
      _
    $region3: #{tpu_custom_call.1} parent=1 // pred_check_branch
      %9 = sbr.rel (0) target = $region5
    $region4: #{tpu_custom_call.1} parent=1 // pred_region
      %s10 = sadd.s32 0, 0
      %s11 = smul.u32 8, %s10
      %s13 = ssub.s32 1024, 1024
      %14 = vsyncadd [#allocation4], %s13
      %s15 = smul.addr %s11, 128
      %s16 = scalar_lea.hbm %s0, %s15
      %s17 = sshll.u32 [#allocation3], 4
      %s18 = int_to_ptr.vmem [resolvable:$true] %s17
      %23 = dma.hbm_to_vmem [thread:$0]  %s16, 1024, %s18, [#allocation4], 128, 128, 8
    $region5: #{tpu_custom_call.1} parent=1 // pred_fallthru
      _
    // Predicated region
    $region6: #{tpu_custom_call.1} parent=1 // pred_check
      _
    $region7: #{tpu_custom_call.1} parent=1 // pred_check_branch
      %25 = sbr.rel (0) target = $region9
    $region8: #{tpu_custom_call.1} parent=1 // pred_region
      %26 = dma.done [#allocation4], 1024
    $region9: #{tpu_custom_call.1} parent=1 // pred_fallthru
      _
    %s27 = sadd.s32 0, 0
    %s28 = smul.u32 8, %s27
    %p29 = scmp.eq.s32.totalorder 0, 0
    // Predicated region
    $region10: #{tpu_custom_call.1} parent=1 // pred_check
      %p30 = pneg %p29
    $region11: #{tpu_custom_call.1} parent=1 // pred_check_branch
      %32 = sbr.rel (%p30) target = $region13
    $region12: #{tpu_custom_call.1} parent=1 // pred_region
      %33 = vst [vmem:[#allocation2] sm:$0xff] 0.0
      %34 = vst [vmem:[#allocation2 + $0x8] sm:$0xff] 0.0
    $region13: #{tpu_custom_call.1} parent=1 // pred_fallthru
      _
    %v35 = vld [vmem:[#allocation3] sm:$0xff]
    %v36 = vld [vmem:[#allocation3 + $0x8] sm:$0xff]
    %v37 = vld [vmem:[#allocation3 + $0x10] sm:$0xff]
    %v38 = vld [vmem:[#allocation3 + $0x18] sm:$0xff]
    %v39 = vld [vmem:[#allocation3 + $0x20] sm:$0xff]
    %v40 = vld [vmem:[#allocation3 + $0x28] sm:$0xff]
    %v41 = vld [vmem:[#allocation3 + $0x30] sm:$0xff]
    %v42 = vld [vmem:[#allocation3 + $0x38] sm:$0xff]
    %v43 = vadd.f32 %v35, 1e-08
    %v44 = vadd.f32 %v36, 1e-08
    %v45 = vadd.f32 %v37, 1e-08
    %v46 = vadd.f32 %v38, 1e-08
    %v47 = vadd.f32 %v39, 1e-08
    %v48 = vadd.f32 %v40, 1e-08
    %v49 = vadd.f32 %v41, 1e-08
    %v50 = vadd.f32 %v42, 1e-08
    %v51 = vlog2.pop %v43
    %v52 = vmul.f32 %v51, 0.6931472
    %v53 = vlog2.pop %v44
    %v54 = vmul.f32 %v53, 0.6931472
    %v55 = vlog2.pop %v45
    %v56 = vmul.f32 %v55, 0.6931472
    %v57 = vlog2.pop %v46
    %v58 = vmul.f32 %v57, 0.6931472
    %v59 = vlog2.pop %v47
    %v60 = vmul.f32 %v59, 0.6931472
    %v61 = vlog2.pop %v48
    %v62 = vmul.f32 %v61, 0.6931472
    %v63 = vlog2.pop %v49
    %v64 = vmul.f32 %v63, 0.6931472
    %v65 = vlog2.pop %v50
    %v66 = vmul.f32 %v65, 0.6931472
    %v67 = vmul.f32 %v35, %v52
    %v68 = vmul.f32 %v36, %v54
    %v69 = vmul.f32 %v37, %v56
    %v70 = vmul.f32 %v38, %v58
    %v71 = vmul.f32 %v39, %v60
    %v72 = vmul.f32 %v40, %v62
    %v73 = vmul.f32 %v41, %v64
    %v74 = vmul.f32 %v42, %v66
    %v75 = vand.u32 2147483647, %v35
    %v76 = vand.u32 2147483647, %v36
    %v77 = vand.u32 2147483647, %v37
    %v78 = vand.u32 2147483647, %v38
    %v79 = vand.u32 2147483647, %v39
    %v80 = vand.u32 2147483647, %v40
    %v81 = vand.u32 2147483647, %v41
    %v82 = vand.u32 2147483647, %v42
    %v83 = vld [vmem:[#allocation2] sm:$0xff]
    %v84 = vadd.f32 %v67, %v68
    %v85 = vadd.f32 %v84, %v69
    %v86 = vadd.f32 %v85, %v70
    %v87 = vadd.f32 %v86, %v71
    %v88 = vadd.f32 %v87, %v72
    %v89 = vadd.f32 %v88, %v73
    %v90 = vadd.f32 %v89, %v74
    %v91 = vadd.f32 %v83, %v90
    %92 = vst [vmem:[#allocation2] sm:$0xff] %v91
    %s93 = scalar_lea.vmem [#allocation2], 8
    %v94 = vld [vmem:[%s93] sm:$0xff]
    %v95 = vadd.f32 %v75, %v76
    %v96 = vadd.f32 %v95, %v77
    %v97 = vadd.f32 %v96, %v78
    %v98 = vadd.f32 %v97, %v79
    %v99 = vadd.f32 %v98, %v80
    %v100 = vadd.f32 %v99, %v81
    %v101 = vadd.f32 %v100, %v82
    %v102 = vadd.f32 %v94, %v101
    %103 = vst [vmem:[%s93] sm:$0xff] %v102
    // Predicated region
    $region14: #{tpu_custom_call.1} parent=1 // pred_check
      %p104 = pneg %p29
    $region15: #{tpu_custom_call.1} parent=1 // pred_check_branch
      %106 = sbr.rel (%p104) target = $region17
    $region16: #{tpu_custom_call.1} parent=1 // pred_region
      %v107 = vld [vmem:[#allocation2] sm:$0xff]
      %v108 = vld [vmem:[#allocation2 + $0x8] sm:$0xff]
      %109 = vst [vmem:[#allocation6] sm:$0xff] %v107
      %110 = vst [vmem:[#allocation6 + $0x8] sm:$0xff] %v108
    $region17: #{tpu_custom_call.1} parent=1 // pred_fallthru
      _
    // Predicated region
    $region18: #{tpu_custom_call.1} parent=1 // pred_check
      _
    $region19: #{tpu_custom_call.1} parent=1 // pred_check_branch
      %112 = sbr.rel (0) target = $region21
    $region20: #{tpu_custom_call.1} parent=1 // pred_region
      %s114 = ssub.s32 256, 256
      %115 = vsyncadd [#allocation5], %s114
      %s116 = sshll.u32 [#allocation6], 4
      %s117 = int_to_ptr.vmem [resolvable:$true] %s116
      %122 = dma.vmem_to_hbm [thread:$0]  %s117, 256, %s1, [#allocation5], 128, 128, 8
    $region21: #{tpu_custom_call.1} parent=1 // pred_fallthru
      _
    // Predicated region
    $region22: #{tpu_custom_call.1} parent=1 // pred_check
      _
    $region23: #{tpu_custom_call.1} parent=1 // pred_check_branch
      %124 = sbr.rel (0) target = $region25
    $region24: #{tpu_custom_call.1} parent=1 // pred_region
      %125 = dma.done [#allocation5], 256
    $region25: #{tpu_custom_call.1} parent=1 // pred_fallthru
      _
    %126 = vsyncpa [#allocation4], 1
    %127 = vsyncpa [#allocation5], 1

</llo_original>
